<compile_context>
chip_gen: v7x
topology: tpu7x:2x2x1
jax: 0.10.0
libtpu: 0.0.40
codegen_flags: <defaults>
</compile_context>

<pallas_src>
import jax
import jax.numpy as jnp
from jax import lax
from jax.experimental import pallas as pl
from jax.experimental.pallas import tpu as pltpu


def _chunk_rows(tb):
    """Largest sub-chunk (<= 64 rows) that divides the batch tile."""
    for c in (64, 32, 16, 8):
        if tb % c == 0:
            return c
    return tb


def _coupling_kernel(z_ref, w1_ref, b1_ref, w2_ref, b2_ref, w3_ref, b3_ref,
                     x_ref, logdet_ref):
    n = x_ref.shape[1]
    tb = z_ref.shape[0]
    C = _chunk_rows(tb)
    n_chunks = tb // C

    # Fused weights/biases are VMEM-resident (constant index maps); load once.
    w1 = w1_ref[...]; b1 = b1_ref[...]
    w2 = w2_ref[...]; b2 = b2_ref[...]
    w3 = w3_ref[...]; b3 = b3_ref[...]

    def do_chunk(row0):
        z = z_ref[pl.ds(row0, C), :]                              # [C, n] f32
        # Three bf16 matmuls with f32 accumulate (single MXU pass each).
        h = jnp.tanh(jnp.dot(z.astype(jnp.bfloat16), w1,
                             preferred_element_type=jnp.float32) + b1)
        h = jnp.tanh(jnp.dot(h.astype(jnp.bfloat16), w2,
                             preferred_element_type=jnp.float32) + b2)
        st = jnp.dot(h.astype(jnp.bfloat16), w3,
                     preferred_element_type=jnp.float32) + b3     # [C, 2n+1]
        s = st[:, :n]           # (1 - mask) * s   (mask folded into w3/b3)
        t = st[:, n:2 * n]      # (1 - mask) * t
        x_ref[pl.ds(row0, C), :] = (z * jnp.exp(s) + t).astype(x_ref.dtype)
        # logdet came out of the matmul as an extra column.
        logdet_ref[pl.ds(row0, C), :] = st[:, 2 * n:2 * n + 1].astype(
            logdet_ref.dtype)

    if n_chunks == 1:
        do_chunk(0)
    else:
        # Rolled inner loop keeps live intermediates bounded for big tiles.
        def body(ci, carry):
            do_chunk(pl.multiple_of(ci * C, C))
            return carry
        lax.fori_loop(0, n_chunks, body, None)


def fuse_params(params, mask):
    """One-time parameter transform.

    Fuses the scale & translation MLPs into a single 3-matmul MLP, folds the
    input mask into layer 1, and folds the (1-mask) output masking plus the
    logdet reduction into layer 3.  Requires a *binary* mask (0/1 entries, as
    in RealNVP), since it relies on
        m*z + (1-m)*(z*exp(s)+t) == z*exp((1-m)*s) + (1-m)*t.
    Matmul weights are returned in bf16 (single MXU pass); biases stay f32.
    """
    n, width = params["w_s1"].shape
    m = mask.astype(jnp.float32)
    om = 1.0 - m

    # Layer 1 [n, 2W]: (z*m) @ W == z @ (diag(m) @ W).
    w1 = jnp.concatenate([params["w_s1"], params["w_t1"]], axis=1) * m[:, None]
    b1 = jnp.concatenate([params["b_s1"], params["b_t1"]]).reshape(1, 2 * width)

    # Layer 2: block-diagonal [2W, 2W].
    zww = jnp.zeros((width, width), jnp.float32)
    w2 = jnp.block([[params["w_s2"], zww], [zww, params["w_t2"]]])
    b2 = jnp.concatenate([params["b_s2"], params["b_t2"]]).reshape(1, 2 * width)

    # Layer 3 [2W, 2n+1]: outputs [(1-m)*s | (1-m)*t | logdet].
    w_s3m = params["w_s3"] * om[None, :]
    w_t3m = params["w_t3"] * om[None, :]
    ld_col = (params["w_s3"] @ om).reshape(width, 1)   # logdet = free MXU column
    zwn = jnp.zeros((width, n), jnp.float32)
    zw1 = jnp.zeros((width, 1), jnp.float32)
    w3 = jnp.block([[w_s3m, zwn, ld_col], [zwn, w_t3m, zw1]])
    b3 = jnp.concatenate(
        [params["b_s3"] * om, params["b_t3"] * om,
         jnp.dot(params["b_s3"], om).reshape(1)]).reshape(1, 2 * n + 1)

    return {"w1": w1.astype(jnp.bfloat16), "b1": b1,
            "w2": w2.astype(jnp.bfloat16), "b2": b2,
            "w3": w3.astype(jnp.bfloat16), "b3": b3}


def affine_coupling_forward(z, fused, *, tb=256):
    """z: [B, n] f32, fused: output of fuse_params.  Returns (x [B,n], logdet [B])."""
    B, n = z.shape

    # Batch tile: multiple of 8 sublanes; capped at half the (rounded) batch
    # so the grid has >= 2 steps and dimension_semantics=("parallel",) can
    # split the batch across v7x's two TensorCores.
    half = ((pl.cdiv(B, 2) + 7) // 8) * 8
    tb = max(8, min(tb, half))
    Bp = ((B + tb - 1) // tb) * tb
    z_in = jnp.pad(z, ((0, Bp - B), (0, 0))) if Bp != B else z

    const = lambda i: (0, 0)   # weights stay VMEM-resident across grid steps

    x, logdet = pl.pallas_call(
        _coupling_kernel,
        out_shape=(jax.ShapeDtypeStruct((Bp, n), jnp.float32),
                   jax.ShapeDtypeStruct((Bp, 1), jnp.float32)),
        grid=(Bp // tb,),
        in_specs=[
            pl.BlockSpec((tb, n), lambda i: (i, 0)),          # z tile (streamed)
            pl.BlockSpec(fused["w1"].shape, const),
            pl.BlockSpec(fused["b1"].shape, const),
            pl.BlockSpec(fused["w2"].shape, const),
            pl.BlockSpec(fused["b2"].shape, const),
            pl.BlockSpec(fused["w3"].shape, const),
            pl.BlockSpec(fused["b3"].shape, const),
        ],
        out_specs=(pl.BlockSpec((tb, n), lambda i: (i, 0)),
                   pl.BlockSpec((tb, 1), lambda i: (i, 0))),
        compiler_params=pltpu.CompilerParams(
            dimension_semantics=("parallel",)),               # megacore / 2-TC split
    )(z_in, fused["w1"], fused["b1"], fused["w2"], fused["b2"],
      fused["w3"], fused["b3"])

    return x[:B], logdet[:B, 0]


def _init_linear(key, in_f, out_f):
    # Mimic PyTorch nn.Linear default init: U(-1/sqrt(in_f), 1/sqrt(in_f)).
    kw, kb = jax.random.split(key)
    bound = 1.0 / jnp.sqrt(jnp.float32(in_f))
    # stored as [in, out] (transposed relative to torch's [out, in])
    w = jax.random.uniform(kw, (in_f, out_f), jnp.float32, -bound, bound)
    b = jax.random.uniform(kb, (out_f,), jnp.float32, -bound, bound)
    return w, b


def make_params(key, n, width):
    keys = jax.random.split(key, 6)
    p = {}
    p["w_s1"], p["b_s1"] = _init_linear(keys[0], n, width)
    p["w_s2"], p["b_s2"] = _init_linear(keys[1], width, width)
    p["w_s3"], p["b_s3"] = _init_linear(keys[2], width, n)
    p["w_t1"], p["b_t1"] = _init_linear(keys[3], n, width)
    p["w_t2"], p["b_t2"] = _init_linear(keys[4], width, width)
    p["w_t3"], p["b_t3"] = _init_linear(keys[5], width, n)
    return p


def reference_forward(z, mask, params):
    """Pure-JAX f32 reference mirroring the PyTorch module (unfused params)."""
    def mlp(x, w1, b1, w2, b2, w3, b3):
        x = x * mask
        x = jnp.tanh(x @ w1 + b1)
        x = jnp.tanh(x @ w2 + b2)
        return x @ w3 + b3

    s = mlp(z, params["w_s1"], params["b_s1"], params["w_s2"], params["b_s2"],
            params["w_s3"], params["b_s3"])
    t = mlp(z, params["w_t1"], params["b_t1"], params["w_t2"], params["b_t2"],
            params["w_t3"], params["b_t3"])
    x = mask * z + (1.0 - mask) * (z * jnp.exp(s) + t)
    logdet = jnp.sum((1.0 - mask) * s, axis=1)
    return x, logdet


if __name__ == "__main__":
    B, n, width = 64, 8, 32
    key = jax.random.PRNGKey(0)
    k_z, k_p = jax.random.split(key)

    # alternating binary mask of length n (layer updates entries where mask == 0)
    mask = (jnp.arange(n) % 2).astype(jnp.float32)
    z = jax.random.normal(k_z, (B, n), jnp.float32)
    params = make_params(k_p, n, width)
    fused = fuse_params(params, mask)   # one-time fusion, not per call

    # Default tb clamps to 32 rows here -> 2 grid steps (both v7x TCs busy).
    x, logdet = affine_coupling_forward(z, fused)
    jax.block_until_ready((x, logdet))

    x_ref, logdet_ref = reference_forward(z, mask, params)
    # bf16 matmul operands -> relaxed tolerance vs. the f32 reference.
    assert jnp.allclose(x, x_ref, atol=5e-2, rtol=5e-2), \
        f"x max err {jnp.max(jnp.abs(x - x_ref))}"
    assert jnp.allclose(logdet, logdet_ref, atol=5e-2, rtol=5e-2), \
        f"logdet max err {jnp.max(jnp.abs(logdet - logdet_ref))}"

    print("KERNEL_OK")
</pallas_src>

<mosaic_0001>
module attributes {stable_mosaic.version = 11 : i64} {
  func.func @_coupling_kernel(%arg0: i32, %arg1: memref<32x8xf32, #tpu.memory_space<vmem>>, %arg2: memref<8x64xbf16, #tpu.memory_space<vmem>>, %arg3: memref<1x64xf32, #tpu.memory_space<vmem>>, %arg4: memref<64x64xbf16, #tpu.memory_space<vmem>>, %arg5: memref<1x64xf32, #tpu.memory_space<vmem>>, %arg6: memref<64x17xbf16, #tpu.memory_space<vmem>>, %arg7: memref<1x17xf32, #tpu.memory_space<vmem>>, %arg8: memref<32x8xf32, #tpu.memory_space<vmem>>, %arg9: memref<32x1xf32, #tpu.memory_space<vmem>>) attributes {dimension_semantics = [#tpu.dimension_semantics<parallel>], iteration_bounds = array<i64: 2>, scalar_prefetch = 0 : i64, scratch_operands = 0 : i64, tpu.core_type = #tpu.core_type<tc>, window_params = [{transform_indices = @transform_0, window_bounds = array<i64: 32, 8>}, {pipeline_mode = #tpu.pipeline_mode<synchronous>, transform_indices = @transform_1, window_bounds = array<i64: 8, 64>}, {pipeline_mode = #tpu.pipeline_mode<synchronous>, transform_indices = @transform_2, window_bounds = array<i64: 1, 64>}, {pipeline_mode = #tpu.pipeline_mode<synchronous>, transform_indices = @transform_3, window_bounds = array<i64: 64, 64>}, {pipeline_mode = #tpu.pipeline_mode<synchronous>, transform_indices = @transform_4, window_bounds = array<i64: 1, 64>}, {pipeline_mode = #tpu.pipeline_mode<synchronous>, transform_indices = @transform_5, window_bounds = array<i64: 64, 17>}, {pipeline_mode = #tpu.pipeline_mode<synchronous>, transform_indices = @transform_6, window_bounds = array<i64: 1, 17>}, {transform_indices = @transform_7, window_bounds = array<i64: 32, 8>}, {transform_indices = @transform_8, window_bounds = array<i64: 32, 1>}]} {
    %c0 = arith.constant 0 : index
    %c0_0 = arith.constant 0 : index
    %0 = vector.load %arg2[%c0, %c0_0] : memref<8x64xbf16, #tpu.memory_space<vmem>>, vector<8x64xbf16>
    %c0_1 = arith.constant 0 : index
    %c0_2 = arith.constant 0 : index
    %1 = vector.load %arg3[%c0_1, %c0_2] : memref<1x64xf32, #tpu.memory_space<vmem>>, vector<1x64xf32>
    %c0_3 = arith.constant 0 : index
    %c0_4 = arith.constant 0 : index
    %2 = vector.load %arg4[%c0_3, %c0_4] : memref<64x64xbf16, #tpu.memory_space<vmem>>, vector<64x64xbf16>
    %c0_5 = arith.constant 0 : index
    %c0_6 = arith.constant 0 : index
    %3 = vector.load %arg5[%c0_5, %c0_6] : memref<1x64xf32, #tpu.memory_space<vmem>>, vector<1x64xf32>
    %c0_7 = arith.constant 0 : index
    %c0_8 = arith.constant 0 : index
    %4 = vector.load %arg6[%c0_7, %c0_8] : memref<64x17xbf16, #tpu.memory_space<vmem>>, vector<64x17xbf16>
    %c0_9 = arith.constant 0 : index
    %c0_10 = arith.constant 0 : index
    %5 = vector.load %arg7[%c0_9, %c0_10] : memref<1x17xf32, #tpu.memory_space<vmem>>, vector<1x17xf32>
    %c0_11 = arith.constant 0 : index
    %c0_12 = arith.constant 0 : index
    %6 = vector.load %arg1[%c0_11, %c0_12] : memref<32x8xf32, #tpu.memory_space<vmem>>, vector<32x8xf32>
    %7 = arith.truncf %6 : vector<32x8xf32> to vector<32x8xbf16>
    %cst = arith.constant dense<0.000000e+00> : vector<32x64xf32>
    %8 = tpu.matmul %7, %0, %cst {dimension_numbers = #tpu.dot_dimension_numbers<[1], [0], [0], [1], [0, 0, 1, 1], [], []>} : vector<32x8xbf16>, vector<8x64xbf16>, vector<32x64xf32> -> vector<32x64xf32>
    %9 = vector.broadcast %1 : vector<1x64xf32> to vector<32x64xf32>
    %10 = arith.addf %8, %9 : vector<32x64xf32>
    %11 = math.tanh %10 : vector<32x64xf32>
    %12 = arith.truncf %11 : vector<32x64xf32> to vector<32x64xbf16>
    %cst_13 = arith.constant dense<0.000000e+00> : vector<32x64xf32>
    %13 = tpu.matmul %12, %2, %cst_13 {dimension_numbers = #tpu.dot_dimension_numbers<[1], [0], [0], [1], [0, 0, 1, 1], [], []>} : vector<32x64xbf16>, vector<64x64xbf16>, vector<32x64xf32> -> vector<32x64xf32>
    %14 = vector.broadcast %3 : vector<1x64xf32> to vector<32x64xf32>
    %15 = arith.addf %13, %14 : vector<32x64xf32>
    %16 = math.tanh %15 : vector<32x64xf32>
    %17 = arith.truncf %16 : vector<32x64xf32> to vector<32x64xbf16>
    %cst_14 = arith.constant dense<0.000000e+00> : vector<32x17xf32>
    %18 = tpu.matmul %17, %4, %cst_14 {dimension_numbers = #tpu.dot_dimension_numbers<[1], [0], [0], [1], [0, 0, 1, 1], [], []>} : vector<32x64xbf16>, vector<64x17xbf16>, vector<32x17xf32> -> vector<32x17xf32>
    %19 = vector.broadcast %5 : vector<1x17xf32> to vector<32x17xf32>
    %20 = arith.addf %18, %19 : vector<32x17xf32>
    %21 = vector.extract_strided_slice %20 {offsets = [0, 0], sizes = [32, 8], strides = [1, 1]} : vector<32x17xf32> to vector<32x8xf32>
    %22 = vector.extract_strided_slice %20 {offsets = [0, 8], sizes = [32, 8], strides = [1, 1]} : vector<32x17xf32> to vector<32x8xf32>
    %23 = math.exp %21 : vector<32x8xf32>
    %24 = arith.mulf %6, %23 : vector<32x8xf32>
    %25 = arith.addf %24, %22 : vector<32x8xf32>
    %c0_15 = arith.constant 0 : index
    %c0_16 = arith.constant 0 : index
    %26 = vector.load %arg8[%c0_15, %c0_16] : memref<32x8xf32, #tpu.memory_space<vmem>>, vector<32x8xf32>
    tpu.vector_store %arg8[%c0_15, %c0_16], %25 {strides = array<i32>} : memref<32x8xf32, #tpu.memory_space<vmem>>, vector<32x8xf32>,
    %27 = vector.extract_strided_slice %20 {offsets = [0, 16], sizes = [32, 1], strides = [1, 1]} : vector<32x17xf32> to vector<32x1xf32>
    %c0_17 = arith.constant 0 : index
    %c0_18 = arith.constant 0 : index
    %28 = vector.load %arg9[%c0_17, %c0_18] : memref<32x1xf32, #tpu.memory_space<vmem>>, vector<32x1xf32>
    tpu.vector_store %arg9[%c0_17, %c0_18], %27 {strides = array<i32>} : memref<32x1xf32, #tpu.memory_space<vmem>>, vector<32x1xf32>,
    return
  }
  func.func @transform_0(%arg0: i32) -> (i32, i32) {
    %c0_i32 = arith.constant 0 : i32
    %c0_i32_0 = arith.constant 0 : i32
    return %arg0, %c0_i32 : i32, i32
  }
  func.func @transform_1(%arg0: i32) -> (i32, i32) {
    %c0_i32 = arith.constant 0 : i32
    %c0_i32_0 = arith.constant 0 : i32
    %c0_i32_1 = arith.constant 0 : i32
    return %c0_i32, %c0_i32_0 : i32, i32
  }
  func.func @transform_2(%arg0: i32) -> (i32, i32) {
    %c0_i32 = arith.constant 0 : i32
    %c0_i32_0 = arith.constant 0 : i32
    %c0_i32_1 = arith.constant 0 : i32
    return %c0_i32, %c0_i32_0 : i32, i32
  }
  func.func @transform_3(%arg0: i32) -> (i32, i32) {
    %c0_i32 = arith.constant 0 : i32
    %c0_i32_0 = arith.constant 0 : i32
    %c0_i32_1 = arith.constant 0 : i32
    return %c0_i32, %c0_i32_0 : i32, i32
  }
  func.func @transform_4(%arg0: i32) -> (i32, i32) {
    %c0_i32 = arith.constant 0 : i32
    %c0_i32_0 = arith.constant 0 : i32
    %c0_i32_1 = arith.constant 0 : i32
    return %c0_i32, %c0_i32_0 : i32, i32
  }
  func.func @transform_5(%arg0: i32) -> (i32, i32) {
    %c0_i32 = arith.constant 0 : i32
    %c0_i32_0 = arith.constant 0 : i32
    %c0_i32_1 = arith.constant 0 : i32
    return %c0_i32, %c0_i32_0 : i32, i32
  }
  func.func @transform_6(%arg0: i32) -> (i32, i32) {
    %c0_i32 = arith.constant 0 : i32
    %c0_i32_0 = arith.constant 0 : i32
    %c0_i32_1 = arith.constant 0 : i32
    return %c0_i32, %c0_i32_0 : i32, i32
  }
  func.func @transform_7(%arg0: i32) -> (i32, i32) {
    %c0_i32 = arith.constant 0 : i32
    %c0_i32_0 = arith.constant 0 : i32
    return %arg0, %c0_i32 : i32, i32
  }
  func.func @transform_8(%arg0: i32) -> (i32, i32) {
    %c0_i32 = arith.constant 0 : i32
    %c0_i32_0 = arith.constant 0 : i32
    return %arg0, %c0_i32 : i32, i32
  }
}

</mosaic_0001>

<llo_original>
// kernel: tpu_custom_call.1
$region0: #{tpu_custom_call.1}
  #allocation0 [shape = 'u32[]', space=smem, size = 0x4, offset = 0x4, fixed_abs, tag = 'smem constant byte address 0x4 - core index']
  #allocation1 [shape = 'u32[144,128]{1,0:T(1,128)}', space=vmem, size = 0x12000, scoped, tag = 'internal scratch']
  %s0 = inlined_call_operand.vmem [shape: f32[64,8], index: 0, kind: input, shape index: {}]
  %s1 = inlined_call_operand.vmem [shape: bf16[8,64], index: 1, kind: input, shape index: {}]
  %s2 = inlined_call_operand.vmem [shape: f32[1,64], index: 2, kind: input, shape index: {}]
  %s3 = inlined_call_operand.vmem [shape: bf16[64,64], index: 3, kind: input, shape index: {}]
  %s4 = inlined_call_operand.vmem [shape: f32[1,64], index: 4, kind: input, shape index: {}]
  %s5 = inlined_call_operand.vmem [shape: bf16[64,17], index: 5, kind: input, shape index: {}]
  %s6 = inlined_call_operand.vmem [shape: f32[1,17], index: 6, kind: input, shape index: {}]
  %s7 = inlined_call_operand.vmem [shape: f32[64,8], index: 7, kind: output, shape index: {0}]
  %s8 = inlined_call_operand.vmem [shape: f32[64,1], index: 8, kind: output, shape index: {1}]
  %9 = xla_tuple %s7, %s8
  %s10 = sld [smem:[#allocation0]]
  $region69: #{tpu_custom_call.1} parent=0
    _
  %s12 = ssub.s32 1, %s10
  %s13 = scalar_select 0, %s12, %s10
  loop: start=0, step=1, limit=4
  $region2: #{tpu_custom_call.1} parent=0 // loop_pre_header
    _
  $region3: #{tpu_custom_call.1} parent=0 // loop_header
    %s15 = sphi 0, %s19
    %p16 = scmp.ge.s32.totalorder %s15, 4
    %s25 = sphi 0, %s27
    %s28 = sphi 0, %s25
    %s29 = sphi 0, %s28
    %s45 = sphi 0, %s29
    %s49 = sphi 0, %s49
    %s51 = sphi 0, %s49
    %s52 = sphi 0, %s51
    %s66 = sphi 0, %s52
    %s70 = sphi 0, %s70
    %s72 = sphi 0, %s70
    %s73 = sphi 0, %s72
    %s87 = sphi 0, %s73
    %s91 = sphi 0, %s91
    %s93 = sphi 0, %s91
    %s94 = sphi 0, %s93
    %s108 = sphi 0, %s94
    %s112 = sphi 0, %s112
    %s114 = sphi 0, %s112
    %s115 = sphi 0, %s114
    %s129 = sphi 0, %s115
    %s133 = sphi 0, %s133
    %s135 = sphi 0, %s133
    %s136 = sphi 0, %s135
    %s150 = sphi 0, %s136
    %s154 = sphi 0, %s154
    %s156 = sphi 0, %s154
    %s157 = sphi 0, %s156
    %s171 = sphi 0, %s157
    %s177 = sphi 0, %s179
    %s180 = sphi 0, %s177
    %s181 = sphi 0, %s180
    %s197 = sphi 0, %s181
    %s203 = sphi 0, %s205
    %s206 = sphi 0, %s203
    %s207 = sphi 0, %s206
    %s223 = sphi 0, %s207
  $region4: #{tpu_custom_call.1} parent=0 // loop_header_branch
    %18 = sbr.rel (%p16) target = $region8
  $region5: #{tpu_custom_call.1} parent=0 // loop_body
    %s20 = ssub.s32 %s15, 1
    %s21 = ssub.s32 %s15, 2
    %s22 = sadd.s32 %s15, 1
    %s23 = ssub.s32 %s15, %s22
    %p24 = scmp.eq.s32.totalorder %s23, 0
    %s26 = sadd.s32 %s25, 1
    %s27 = scalar_select %p24, %s25, %s26
    %p30 = pneg %p24
    %p31 = scmp.eq.s32.totalorder %s15, 1
    %p32 = por %p30, %p31
    %p33 = scmp.ne.s32.totalorder %s25, %s28
    %p34 = scmp.eq.s32.totalorder %s15, 0
    %p35 = por %p33, %p34
    %p36 = scmp.ne.s32.totalorder %s25, %s28
    %p37 = scmp.eq.s32.totalorder %s20, 1
    %p38 = por %p36, %p37
    %p39 = scmp.ne.s32.totalorder %s28, %s29
    %p40 = scmp.eq.s32.totalorder %s20, 0
    %p41 = por %p39, %p40
    %p42 = scmp.ne.s32.totalorder %s28, %s29
    %p43 = scmp.eq.s32.totalorder %s21, 1
    %p44 = por %p42, %p43
    %p46 = scmp.ne.s32.totalorder %s29, %s45
    %p47 = scmp.eq.s32.totalorder %s21, 0
    %p48 = por %p46, %p47
    %s50 = sadd.s32 %s49, 1
    %p53 = scmp.eq.s32.totalorder %s15, 1
    %p54 = scmp.ne.s32.totalorder %s49, %s51
    %p55 = scmp.eq.s32.totalorder %s15, 0
    %p56 = por %p54, %p55
    %p57 = scmp.ne.s32.totalorder %s49, %s51
    %p58 = scmp.eq.s32.totalorder %s20, 1
    %p59 = por %p57, %p58
    %p60 = scmp.ne.s32.totalorder %s51, %s52
    %p61 = scmp.eq.s32.totalorder %s20, 0
    %p62 = por %p60, %p61
    %p63 = scmp.ne.s32.totalorder %s51, %s52
    %p64 = scmp.eq.s32.totalorder %s21, 1
    %p65 = por %p63, %p64
    %p67 = scmp.ne.s32.totalorder %s52, %s66
    %p68 = scmp.eq.s32.totalorder %s21, 0
    %p69 = por %p67, %p68
    %s71 = sadd.s32 %s70, 1
    %p74 = scmp.eq.s32.totalorder %s15, 1
    %p75 = scmp.ne.s32.totalorder %s70, %s72
    %p76 = scmp.eq.s32.totalorder %s15, 0
    %p77 = por %p75, %p76
    %p78 = scmp.ne.s32.totalorder %s70, %s72
    %p79 = scmp.eq.s32.totalorder %s20, 1
    %p80 = por %p78, %p79
    %p81 = scmp.ne.s32.totalorder %s72, %s73
    %p82 = scmp.eq.s32.totalorder %s20, 0
    %p83 = por %p81, %p82
    %p84 = scmp.ne.s32.totalorder %s72, %s73
    %p85 = scmp.eq.s32.totalorder %s21, 1
    %p86 = por %p84, %p85
    %p88 = scmp.ne.s32.totalorder %s73, %s87
    %p89 = scmp.eq.s32.totalorder %s21, 0
    %p90 = por %p88, %p89
    %s92 = sadd.s32 %s91, 1
    %p95 = scmp.eq.s32.totalorder %s15, 1
    %p96 = scmp.ne.s32.totalorder %s91, %s93
    %p97 = scmp.eq.s32.totalorder %s15, 0
    %p98 = por %p96, %p97
    %p99 = scmp.ne.s32.totalorder %s91, %s93
    %p100 = scmp.eq.s32.totalorder %s20, 1
    %p101 = por %p99, %p100
    %p102 = scmp.ne.s32.totalorder %s93, %s94
    %p103 = scmp.eq.s32.totalorder %s20, 0
    %p104 = por %p102, %p103
    %p105 = scmp.ne.s32.totalorder %s93, %s94
    %p106 = scmp.eq.s32.totalorder %s21, 1
    %p107 = por %p105, %p106
    %p109 = scmp.ne.s32.totalorder %s94, %s108
    %p110 = scmp.eq.s32.totalorder %s21, 0
    %p111 = por %p109, %p110
    %s113 = sadd.s32 %s112, 1
    %p116 = scmp.eq.s32.totalorder %s15, 1
    %p117 = scmp.ne.s32.totalorder %s112, %s114
    %p118 = scmp.eq.s32.totalorder %s15, 0
    %p119 = por %p117, %p118
    %p120 = scmp.ne.s32.totalorder %s112, %s114
    %p121 = scmp.eq.s32.totalorder %s20, 1
    %p122 = por %p120, %p121
    %p123 = scmp.ne.s32.totalorder %s114, %s115
    %p124 = scmp.eq.s32.totalorder %s20, 0
    %p125 = por %p123, %p124
    %p126 = scmp.ne.s32.totalorder %s114, %s115
    %p127 = scmp.eq.s32.totalorder %s21, 1
    %p128 = por %p126, %p127
    %p130 = scmp.ne.s32.totalorder %s115, %s129
    %p131 = scmp.eq.s32.totalorder %s21, 0
    %p132 = por %p130, %p131
    %s134 = sadd.s32 %s133, 1
    %p137 = scmp.eq.s32.totalorder %s15, 1
    %p138 = scmp.ne.s32.totalorder %s133, %s135
    %p139 = scmp.eq.s32.totalorder %s15, 0
    %p140 = por %p138, %p139
    %p141 = scmp.ne.s32.totalorder %s133, %s135
    %p142 = scmp.eq.s32.totalorder %s20, 1
    %p143 = por %p141, %p142
    %p144 = scmp.ne.s32.totalorder %s135, %s136
    %p145 = scmp.eq.s32.totalorder %s20, 0
    %p146 = por %p144, %p145
    %p147 = scmp.ne.s32.totalorder %s135, %s136
    %p148 = scmp.eq.s32.totalorder %s21, 1
    %p149 = por %p147, %p148
    %p151 = scmp.ne.s32.totalorder %s136, %s150
    %p152 = scmp.eq.s32.totalorder %s21, 0
    %p153 = por %p151, %p152
    %s155 = sadd.s32 %s154, 1
    %p158 = scmp.eq.s32.totalorder %s15, 1
    %p159 = scmp.ne.s32.totalorder %s154, %s156
    %p160 = scmp.eq.s32.totalorder %s15, 0
    %p161 = por %p159, %p160
    %p162 = scmp.ne.s32.totalorder %s154, %s156
    %p163 = scmp.eq.s32.totalorder %s20, 1
    %p164 = por %p162, %p163
    %p165 = scmp.ne.s32.totalorder %s156, %s157
    %p166 = scmp.eq.s32.totalorder %s20, 0
    %p167 = por %p165, %p166
    %p168 = scmp.ne.s32.totalorder %s156, %s157
    %p169 = scmp.eq.s32.totalorder %s21, 1
    %p170 = por %p168, %p169
    %p172 = scmp.ne.s32.totalorder %s157, %s171
    %p173 = scmp.eq.s32.totalorder %s21, 0
    %p174 = por %p172, %p173
    %s175 = ssub.s32 %s15, %s22
    %p176 = scmp.eq.s32.totalorder %s175, 0
    %s178 = sadd.s32 %s177, 1
    %s179 = scalar_select %p176, %s177, %s178
    %p182 = pneg %p176
    %p183 = scmp.eq.s32.totalorder %s15, 1
    %p184 = por %p182, %p183
    %p185 = scmp.ne.s32.totalorder %s177, %s180
    %p186 = scmp.eq.s32.totalorder %s15, 0
    %p187 = por %p185, %p186
    %p188 = scmp.ne.s32.totalorder %s177, %s180
    %p189 = scmp.eq.s32.totalorder %s20, 1
    %p190 = por %p188, %p189
    %p191 = scmp.ne.s32.totalorder %s180, %s181
    %p192 = scmp.eq.s32.totalorder %s20, 0
    %p193 = por %p191, %p192
    %p194 = scmp.ne.s32.totalorder %s180, %s181
    %p195 = scmp.eq.s32.totalorder %s21, 1
    %p196 = por %p194, %p195
    %p198 = scmp.ne.s32.totalorder %s181, %s197
    %p199 = scmp.eq.s32.totalorder %s21, 0
    %p200 = por %p198, %p199
    %s201 = ssub.s32 %s15, %s22
    %p202 = scmp.eq.s32.totalorder %s201, 0
    %s204 = sadd.s32 %s203, 1
    %s205 = scalar_select %p202, %s203, %s204
    %p208 = pneg %p202
    %p209 = scmp.eq.s32.totalorder %s15, 1
    %p210 = por %p208, %p209
    %p211 = scmp.ne.s32.totalorder %s203, %s206
    %p212 = scmp.eq.s32.totalorder %s15, 0
    %p213 = por %p211, %p212
    %p214 = scmp.ne.s32.totalorder %s203, %s206
    %p215 = scmp.eq.s32.totalorder %s20, 1
    %p216 = por %p214, %p215
    %p217 = scmp.ne.s32.totalorder %s206, %s207
    %p218 = scmp.eq.s32.totalorder %s20, 0
    %p219 = por %p217, %p218
    %p220 = scmp.ne.s32.totalorder %s206, %s207
    %p221 = scmp.eq.s32.totalorder %s21, 1
    %p222 = por %p220, %p221
    %p224 = scmp.ne.s32.totalorder %s207, %s223
    %p225 = scmp.eq.s32.totalorder %s21, 0
    %p226 = por %p224, %p225
    %p227 = scmp.le.s32.totalorder 1, %s15
    %p228 = scmp.lt.s32.totalorder %s15, 3
    %p229 = pnand %p227, %p228
    %p230 = pneg %p229
    // Predicated region
    $region9: #{tpu_custom_call.1} parent=5 // pred_check
      _
    $region10: #{tpu_custom_call.1} parent=5 // pred_check_branch
      %232 = sbr.rel (%p229) target = $region12
    $region11: #{tpu_custom_call.1} parent=5 // pred_region
      %s233 = ssub.s32 %s15, 1
      // Predicated region
      $region13: #{tpu_custom_call.1} parent=11 // pred_check
        %p234 = pneg %p62
      $region14: #{tpu_custom_call.1} parent=11 // pred_check_branch
        %236 = sbr.rel (%p234) target = $region16
      $region15: #{tpu_custom_call.1} parent=11 // pred_region
        _
      $region16: #{tpu_custom_call.1} parent=11 // pred_fallthru
        _
      // Predicated region
      $region17: #{tpu_custom_call.1} parent=11 // pred_check
        %p237 = pneg %p83
      $region18: #{tpu_custom_call.1} parent=11 // pred_check_branch
        %239 = sbr.rel (%p237) target = $region20
      $region19: #{tpu_custom_call.1} parent=11 // pred_region
        _
      $region20: #{tpu_custom_call.1} parent=11 // pred_fallthru
        _
      // Predicated region
      $region21: #{tpu_custom_call.1} parent=11 // pred_check
        %p240 = pneg %p104
      $region22: #{tpu_custom_call.1} parent=11 // pred_check_branch
        %242 = sbr.rel (%p240) target = $region24
      $region23: #{tpu_custom_call.1} parent=11 // pred_region
        _
      $region24: #{tpu_custom_call.1} parent=11 // pred_fallthru
        _
      // Predicated region
      $region25: #{tpu_custom_call.1} parent=11 // pred_check
        %p243 = pneg %p125
      $region26: #{tpu_custom_call.1} parent=11 // pred_check_branch
        %245 = sbr.rel (%p243) target = $region28
      $region27: #{tpu_custom_call.1} parent=11 // pred_region
        _
      $region28: #{tpu_custom_call.1} parent=11 // pred_fallthru
        _
      // Predicated region
      $region29: #{tpu_custom_call.1} parent=11 // pred_check
        %p246 = pneg %p146
      $region30: #{tpu_custom_call.1} parent=11 // pred_check_branch
        %248 = sbr.rel (%p246) target = $region32
      $region31: #{tpu_custom_call.1} parent=11 // pred_region
        _
      $region32: #{tpu_custom_call.1} parent=11 // pred_fallthru
        _
      // Predicated region
      $region33: #{tpu_custom_call.1} parent=11 // pred_check
        %p249 = pneg %p167
      $region34: #{tpu_custom_call.1} parent=11 // pred_check_branch
        %251 = sbr.rel (%p249) target = $region36
      $region35: #{tpu_custom_call.1} parent=11 // pred_region
        _
      $region36: #{tpu_custom_call.1} parent=11 // pred_fallthru
        _
    $region12: #{tpu_custom_call.1} parent=5 // pred_fallthru
      _
    %p252 = scmp.lt.s32.totalorder %s15, 2
    // Predicated region
    $region37: #{tpu_custom_call.1} parent=5 // pred_check
      %p253 = pneg %p252
    $region38: #{tpu_custom_call.1} parent=5 // pred_check_branch
      %255 = sbr.rel (%p253) target = $region40
    $region39: #{tpu_custom_call.1} parent=5 // pred_region
      // Predicated region
      $region41: #{tpu_custom_call.1} parent=39 // pred_check
        %p256 = pneg %p35
      $region42: #{tpu_custom_call.1} parent=39 // pred_check_branch
        %258 = sbr.rel (%p256) target = $region44
      $region43: #{tpu_custom_call.1} parent=39 // pred_region
        %s259 = smul.u32 4, %s15
        %p260 = scmp.lt.s32.totalorder %s259, 7
        %s261 = scalar_select %p260, %s259, 7
        %s262 = smul.addr %s261, 8
        %s263 = scalar_lea.vmem %s0, %s262
        %s264 = smul.u32 4, %s15
      $region44: #{tpu_custom_call.1} parent=39 // pred_fallthru
        _
    $region40: #{tpu_custom_call.1} parent=5 // pred_fallthru
      _
    %p265 = scmp.le.s32.totalorder 1, %s15
    %p266 = scmp.lt.s32.totalorder %s15, 3
    %p267 = pnand %p265, %p266
    %p268 = pneg %p267
    // Predicated region
    $region45: #{tpu_custom_call.1} parent=5 // pred_check
      _
    $region46: #{tpu_custom_call.1} parent=5 // pred_check_branch
      %270 = sbr.rel (%p267) target = $region48
    $region47: #{tpu_custom_call.1} parent=5 // pred_region
      %s271 = ssub.s32 %s15, 1
      %s272 = smul.u32 4, %s20
      %p273 = scmp.lt.s32.totalorder %s272, 7
      %s274 = scalar_select %p273, %s272, 7
      %s275 = smul.addr %s274, 8
      %s276 = scalar_lea.vmem %s0, %s275
      %p277 = pneg %p41
      %p278 = pneg %p38
      %p279 = pneg %p62
      %p280 = pneg %p59
      %p281 = pneg %p83
      %p282 = pneg %p80
      %p283 = pneg %p104
      %p284 = pneg %p101
      %p285 = pneg %p125
      %p286 = pneg %p122
      %p287 = pneg %p146
      %p288 = pneg %p143
      %p289 = pneg %p167
      %p290 = pneg %p164
      %p291 = pneg %p193
      %p292 = pneg %p190
      %s293 = smul.u32 4, %s20
      %p294 = scmp.lt.s32.totalorder %s293, 7
      %s295 = scalar_select %p294, %s293, 7
      %s296 = smul.addr %s295, 8
      %s297 = scalar_lea.vmem %s7, %s296
      %p298 = pneg %p219
      %p299 = pneg %p216
      %s300 = smul.u32 4, %s20
      %p301 = scmp.lt.s32.totalorder %s300, 7
      %s302 = scalar_select %p301, %s300, 7
      %s303 = smul.addr %s302, 8
      %s304 = scalar_lea.vmem %s8, %s303
      %s305 = smul.u32 4, %s20
      %p306 = scmp.lt.s32.totalorder %s305, 7
      %s307 = scalar_select %p306, %s305, 7
      %s308 = smul.addr %s307, 8
      %s309 = scalar_lea.vmem %s0, %s308
      %s310 = smul.u32 4, %s20
      %s311 = smul.u32 4, %s20
      %p312 = scmp.lt.s32.totalorder %s311, 7
      %s313 = scalar_select %p312, %s311, 7
      %s314 = smul.addr %s313, 8
      %s315 = scalar_lea.vmem %s7, %s314
      %s316 = smul.u32 4, %s20
      %s317 = smul.u32 4, %s20
      %p318 = scmp.lt.s32.totalorder %s317, 7
      %s319 = scalar_select %p318, %s317, 7
      %s320 = smul.addr %s319, 8
      %s321 = scalar_lea.vmem %s8, %s320
      %s322 = smul.u32 4, %s20
      %v324 = vld [vmem:[%s1] sm:$0xf]
      %v325 = vld [vmem:[%s2] sm:$0x1]
      %v326 = vld [vmem:[%s3] sm:$0xf]
      %v327 = vld [vmem:[%s3 + $0x4] sm:$0xf]
      %v328 = vld [vmem:[%s3 + $0x8] sm:$0xf]
      %v329 = vld [vmem:[%s3 + $0xc] sm:$0xf]
      %v330 = vld [vmem:[%s3 + $0x10] sm:$0xf]
      %v331 = vld [vmem:[%s3 + $0x14] sm:$0xf]
      %v332 = vld [vmem:[%s3 + $0x18] sm:$0xf]
      %v333 = vld [vmem:[%s3 + $0x1c] sm:$0xf]
      %v334 = vld [vmem:[%s4] sm:$0x1]
      %v335 = vld [vmem:[%s5] sm:$0xf]
      %v336 = vld [vmem:[%s5 + $0x4] sm:$0xf]
      %v337 = vld [vmem:[%s5 + $0x8] sm:$0xf]
      %v338 = vld [vmem:[%s5 + $0xc] sm:$0xf]
      %v339 = vld [vmem:[%s5 + $0x10] sm:$0xf]
      %v340 = vld [vmem:[%s5 + $0x14] sm:$0xf]
      %v341 = vld [vmem:[%s5 + $0x18] sm:$0xf]
      %v342 = vld [vmem:[%s5 + $0x1c] sm:$0xf]
      %v343 = vld [vmem:[%s6] sm:$0x1]
      %v344 = vld [vmem:[%s309] sm:$0xff]
      %v345 = vld [vmem:[%s309 + $0x8] sm:$0xff]
      %v346 = vld [vmem:[%s309 + $0x10] sm:$0xff]
      %v347 = vld [vmem:[%s309 + $0x18] sm:$0xff]
      %v348 = vpack.c.bf16 %v345, %v344
      %v349 = vpack.c.bf16 %v347, %v346
      %v351 = vlaneseq
      %v352 = vshrl.u32 %v351, 7
      %v353 = vsub.s32 0, %v352
      %v354 = vrot.slane %v325, %v353
      %vm356 = vcmask 64512
      %v358 = vsel %vm356, %v348, 0
      %v361 = vsel %vm356, %v349, 0
      %vm363 = vcmask 1043456
      %v365 = vsel %vm363, %v324, 0
      %367 = vmatprep.subr.bf16.mxu0 0
      %368 = vmatpush1.bf16.msra.mxu0 %v365
      %369 = vmatprep.subr.bf16.mxu0 0
      %370 = vmatpush1.bf16.msra.mxu0 0
      %371 = vmatprep.subr.bf16.mxu0 0
      %372 = vmatpush1.bf16.msra.mxu0 0
      %373 = vmatprep.subr.bf16.mxu0 0
      %374 = vmatpush1.bf16.msra.mxu0 0
      %375 = vmatprep.subr.bf16.mxu0 0
      %376 = vmatpush1.bf16.msra.mxu0 0
      %377 = vmatprep.subr.bf16.mxu0 0
      %378 = vmatpush1.bf16.msra.mxu0 0
      %379 = vmatprep.subr.bf16.mxu0 0
      %380 = vmatpush1.bf16.msra.mxu0 0
      %381 = vmatprep.subr.bf16.mxu0 0
      %382 = vmatpush1.bf16.msra.mxu0 0
      %383 = vmatprep.subr.bf16.mxu0 0
      %384 = vmatpush1.bf16.msra.mxu0 0
      %385 = vmatprep.subr.bf16.mxu0 0
      %386 = vmatpush1.bf16.msra.mxu0 0
      %387 = vmatprep.subr.bf16.mxu0 0
      %388 = vmatpush1.bf16.msra.mxu0 0
      %389 = vmatprep.subr.bf16.mxu0 0
      %390 = vmatpush1.bf16.msra.mxu0 0
      %391 = vmatprep.subr.bf16.mxu0 0
      %392 = vmatpush1.bf16.msra.mxu0 0
      %393 = vmatprep.subr.bf16.mxu0 0
      %394 = vmatpush1.bf16.msra.mxu0 0
      %395 = vmatprep.subr.bf16.mxu0 0
      %396 = vmatpush1.bf16.msra.mxu0 0
      %397 = vmatprep.subr.bf16.mxu0 0
      %398 = vmatpush1.bf16.msra.mxu0 0
      %399 = vmatprep.mubr.bf16.mxu0 0
      %400 = vmatmul.mubr.bf16.gmra.mrb[0].mxu0 %v358
      %v401 = vpop.f32.mrb[0].mxu0
      %v402 = vadd.f32 %v354, %v401
      %v403 = vpop.f32.mrb[0].mxu0
      %v404 = vpop.f32.mrb[0].mxu0
      %v405 = vadd.f32 %v354, %v404
      %v406 = vpop.f32.mrb[0].mxu0
      %407 = vmatprep.mubr.bf16.mxu0 0
      %408 = vmatmul.mubr.bf16.gmra.mrb[0].mxu0 %v361
      %v409 = vpop.f32.mrb[0].mxu0
      %v410 = vadd.f32 %v354, %v409
      %v411 = vpop.f32.mrb[0].mxu0
      %v412 = vpop.f32.mrb[0].mxu0
      %v413 = vadd.f32 %v354, %v412
      %v414 = vpop.f32.mrb[0].mxu0
      %415 = vdwg.mxu0
      %v416 = vtanh.pop %v402
      %v417 = vtanh.pop %v405
      %v418 = vtanh.pop %v410
      %v419 = vtanh.pop %v413
      %v420 = vpack.c.bf16 %v417, %v416
      %v421 = vpack.c.bf16 %v419, %v418
      %v423 = vlaneseq
      %v424 = vshrl.u32 %v423, 7
      %v425 = vsub.s32 0, %v424
      %v426 = vrot.slane %v334, %v425
      %v436 = vunpack.c.l.b16 %v326
      %v437 = vunpack.c.l.b16 %v327
      %v438 = vunpack.c.l.b16 %v328
      %v439 = vunpack.c.l.b16 %v329
      %v440 = vunpack.c.l.b16 %v330
      %v441 = vunpack.c.l.b16 %v331
      %v442 = vunpack.c.l.b16 %v332
      %v443 = vunpack.c.l.b16 %v333
      %v444 = vpack.c.b16 %v437, %v436
      %v445 = vpack.c.b16 %v439, %v438
      %v446 = vpack.c.b16 %v441, %v440
      %v447 = vpack.c.b16 %v443, %v442
      %vm452 = vcmask 523264
      %v454 = vsel %vm452, %v420, 0
      %v457 = vsel %vm452, %v421, 0
      %459 = vmatprep.subr.bf16.mxu0 0
      %460 = vmatpush1.bf16.msra.mxu0 %v444
      %461 = vmatprep.subr.bf16.mxu0 0
      %462 = vmatpush1.bf16.msra.mxu0 %v445
      %463 = vmatprep.subr.bf16.mxu0 0
      %464 = vmatpush1.bf16.msra.mxu0 %v446
      %465 = vmatprep.subr.bf16.mxu0 0
      %466 = vmatpush1.bf16.msra.mxu0 %v447
      %467 = vmatprep.subr.bf16.mxu0 0
      %468 = vmatpush1.bf16.msra.mxu0 0
      %469 = vmatprep.subr.bf16.mxu0 0
      %470 = vmatpush1.bf16.msra.mxu0 0
      %471 = vmatprep.subr.bf16.mxu0 0
      %472 = vmatpush1.bf16.msra.mxu0 0
      %473 = vmatprep.subr.bf16.mxu0 0
      %474 = vmatpush1.bf16.msra.mxu0 0
      %475 = vmatprep.subr.bf16.mxu0 0
      %476 = vmatpush1.bf16.msra.mxu0 0
      %477 = vmatprep.subr.bf16.mxu0 0
      %478 = vmatpush1.bf16.msra.mxu0 0
      %479 = vmatprep.subr.bf16.mxu0 0
      %480 = vmatpush1.bf16.msra.mxu0 0
      %481 = vmatprep.subr.bf16.mxu0 0
      %482 = vmatpush1.bf16.msra.mxu0 0
      %483 = vmatprep.subr.bf16.mxu0 0
      %484 = vmatpush1.bf16.msra.mxu0 0
      %485 = vmatprep.subr.bf16.mxu0 0
      %486 = vmatpush1.bf16.msra.mxu0 0
      %487 = vmatprep.subr.bf16.mxu0 0
      %488 = vmatpush1.bf16.msra.mxu0 0
      %489 = vmatprep.subr.bf16.mxu0 0
      %490 = vmatpush1.bf16.msra.mxu0 0
      %491 = vmatprep.mubr.bf16.mxu0 0
      %492 = vmatmul.mubr.bf16.gmra.mrb[0].mxu0 %v454
      %v493 = vpop.f32.mrb[0].mxu0
      %v494 = vadd.f32 %v426, %v493
      %v495 = vpop.f32.mrb[0].mxu0
      %v496 = vpop.f32.mrb[0].mxu0
      %v497 = vadd.f32 %v426, %v496
      %v498 = vpop.f32.mrb[0].mxu0
      %499 = vmatprep.mubr.bf16.mxu0 0
      %500 = vmatmul.mubr.bf16.gmra.mrb[0].mxu0 %v457
      %v501 = vpop.f32.mrb[0].mxu0
      %v502 = vadd.f32 %v426, %v501
      %v503 = vpop.f32.mrb[0].mxu0
      %v504 = vpop.f32.mrb[0].mxu0
      %v505 = vadd.f32 %v426, %v504
      %v506 = vpop.f32.mrb[0].mxu0
      %507 = vdwg.mxu0
      %v508 = vtanh.pop %v494
      %v509 = vtanh.pop %v497
      %v510 = vtanh.pop %v502
      %v511 = vtanh.pop %v505
      %v512 = vpack.c.bf16 %v509, %v508
      %v513 = vpack.c.bf16 %v511, %v510
      %v515 = vlaneseq
      %v516 = vshrl.u32 %v515, 7
      %v517 = vsub.s32 0, %v516
      %v518 = vrot.slane %v343, %v517
      %v528 = vunpack.c.l.b16 %v335
      %v529 = vunpack.c.l.b16 %v336
      %v530 = vunpack.c.l.b16 %v337
      %v531 = vunpack.c.l.b16 %v338
      %v532 = vunpack.c.l.b16 %v339
      %v533 = vunpack.c.l.b16 %v340
      %v534 = vunpack.c.l.b16 %v341
      %v535 = vunpack.c.l.b16 %v342
      %v536 = vpack.c.b16 %v529, %v528
      %v537 = vpack.c.b16 %v531, %v530
      %v538 = vpack.c.b16 %v533, %v532
      %v539 = vpack.c.b16 %v535, %v534
      %v545 = vsel %vm452, %v512, 0
      %v548 = vsel %vm452, %v513, 0
      %550 = vmatprep.subr.bf16.mxu0 0
      %551 = vmatpush1.bf16.msra.mxu0 %v536
      %552 = vmatprep.subr.bf16.mxu0 0
      %553 = vmatpush1.bf16.msra.mxu0 %v537
      %554 = vmatprep.subr.bf16.mxu0 0
      %555 = vmatpush1.bf16.msra.mxu0 %v538
      %556 = vmatprep.subr.bf16.mxu0 0
      %557 = vmatpush1.bf16.msra.mxu0 %v539
      %558 = vmatprep.subr.bf16.mxu0 0
      %559 = vmatpush1.bf16.msra.mxu0 0
      %560 = vmatprep.subr.bf16.mxu0 0
      %561 = vmatpush1.bf16.msra.mxu0 0
      %562 = vmatprep.subr.bf16.mxu0 0
      %563 = vmatpush1.bf16.msra.mxu0 0
      %564 = vmatprep.subr.bf16.mxu0 0
      %565 = vmatpush1.bf16.msra.mxu0 0
      %566 = vmatprep.subr.bf16.mxu0 0
      %567 = vmatpush1.bf16.msra.mxu0 0
      %568 = vmatprep.subr.bf16.mxu0 0
      %569 = vmatpush1.bf16.msra.mxu0 0
      %570 = vmatprep.subr.bf16.mxu0 0
      %571 = vmatpush1.bf16.msra.mxu0 0
      %572 = vmatprep.subr.bf16.mxu0 0
      %573 = vmatpush1.bf16.msra.mxu0 0
      %574 = vmatprep.subr.bf16.mxu0 0
      %575 = vmatpush1.bf16.msra.mxu0 0
      %576 = vmatprep.subr.bf16.mxu0 0
      %577 = vmatpush1.bf16.msra.mxu0 0
      %578 = vmatprep.subr.bf16.mxu0 0
      %579 = vmatpush1.bf16.msra.mxu0 0
      %580 = vmatprep.subr.bf16.mxu0 0
      %581 = vmatpush1.bf16.msra.mxu0 0
      %582 = vmatprep.mubr.bf16.mxu0 0
      %583 = vmatmul.mubr.bf16.gmra.mrb[0].mxu0 %v545
      %v584 = vpop.f32.mrb[0].mxu0
      %v585 = vadd.f32 %v518, %v584
      %v586 = vpop.f32.mrb[0].mxu0
      %v587 = vpop.f32.mrb[0].mxu0
      %v588 = vadd.f32 %v518, %v587
      %v589 = vpop.f32.mrb[0].mxu0
      %590 = vmatprep.mubr.bf16.mxu0 0
      %591 = vmatmul.mubr.bf16.gmra.mrb[0].mxu0 %v548
      %v592 = vpop.f32.mrb[0].mxu0
      %v593 = vadd.f32 %v518, %v592
      %v594 = vpop.f32.mrb[0].mxu0
      %v595 = vpop.f32.mrb[0].mxu0
      %v596 = vadd.f32 %v518, %v595
      %v597 = vpop.f32.mrb[0].mxu0
      %598 = vdwg.mxu0
      %v599 = vmul.f32 %v585, 1.442695
      %v600 = vpow.pop %v599
      %v601 = vmul.f32 %v588, 1.442695
      %v602 = vpow.pop %v601
      %v603 = vmul.f32 %v593, 1.442695
      %v604 = vpow.pop %v603
      %v605 = vmul.f32 %v596, 1.442695
      %v606 = vpow.pop %v605
      %v607 = vmul.f32 %v344, %v600
      %v608 = vmul.f32 %v345, %v602
      %v609 = vmul.f32 %v346, %v604
      %v610 = vmul.f32 %v347, %v606
      %615 = vrot.lane.b32.xlu0 %v585, 120
      %v616 = vpop.permute.xlu0 %615
      %617 = vrot.lane.b32.xlu0 %v588, 120
      %v618 = vpop.permute.xlu0 %617
      %619 = vrot.lane.b32.xlu0 %v593, 120
      %v620 = vpop.permute.xlu0 %619
      %621 = vrot.lane.b32.xlu0 %v596, 120
      %v622 = vpop.permute.xlu0 %621
      %v627 = vadd.f32 %v607, %v616
      %v628 = vadd.f32 %v608, %v618
      %v629 = vadd.f32 %v609, %v620
      %v630 = vadd.f32 %v610, %v622
      %631 = vst.msk [vmem:[%s315] sm:$0xff] %vm356, %v627
      %632 = vst.msk [vmem:[%s315 + $0x8] sm:$0xff] %vm356, %v628
      %633 = vst.msk [vmem:[%s315 + $0x10] sm:$0xff] %vm356, %v629
      %634 = vst.msk [vmem:[%s315 + $0x18] sm:$0xff] %vm356, %v630
      %635 = vrot.lane.b32.xlu0 %v585, 112
      %v636 = vpop.permute.xlu0 %635
      %637 = vrot.lane.b32.xlu0 %v588, 112
      %v638 = vpop.permute.xlu0 %637
      %639 = vrot.lane.b32.xlu0 %v593, 112
      %v640 = vpop.permute.xlu0 %639
      %641 = vrot.lane.b32.xlu0 %v596, 112
      %v642 = vpop.permute.xlu0 %641
      %vm647 = vcmask 7168
      %648 = vst.msk [vmem:[%s321] sm:$0xff] %vm647, %v636
      %649 = vst.msk [vmem:[%s321 + $0x8] sm:$0xff] %vm647, %v638
      %650 = vst.msk [vmem:[%s321 + $0x10] sm:$0xff] %vm647, %v640
      %651 = vst.msk [vmem:[%s321 + $0x18] sm:$0xff] %vm647, %v642
      %s652 = smul.u32 4, %s20
      %p653 = scmp.lt.s32.totalorder %s652, 7
      %s654 = scalar_select %p653, %s652, 7
      %s655 = smul.addr %s654, 8
      %s656 = scalar_lea.vmem %s7, %s655
      %s657 = smul.u32 4, %s20
      %p658 = scmp.lt.s32.totalorder %s657, 7
      %s659 = scalar_select %p658, %s657, 7
      %s660 = smul.addr %s659, 8
      %s661 = scalar_lea.vmem %s8, %s660
      // Predicated region
      $region49: #{tpu_custom_call.1} parent=47 // pred_check
        %p662 = pneg %p190
      $region50: #{tpu_custom_call.1} parent=47 // pred_check_branch
        %664 = sbr.rel (%p662) target = $region52
      $region51: #{tpu_custom_call.1} parent=47 // pred_region
        %s665 = smul.u32 4, %s20
      $region52: #{tpu_custom_call.1} parent=47 // pred_fallthru
        _
      // Predicated region
      $region53: #{tpu_custom_call.1} parent=47 // pred_check
        %p666 = pneg %p216
      $region54: #{tpu_custom_call.1} parent=47 // pred_check_branch
        %668 = sbr.rel (%p666) target = $region56
      $region55: #{tpu_custom_call.1} parent=47 // pred_region
        %s669 = smul.u32 4, %s20
      $region56: #{tpu_custom_call.1} parent=47 // pred_fallthru
        _
    $region48: #{tpu_custom_call.1} parent=5 // pred_fallthru
      _
    %p670 = scmp.le.s32.totalorder 2, %s15
    // Predicated region
    $region57: #{tpu_custom_call.1} parent=5 // pred_check
      %p671 = pneg %p670
    $region58: #{tpu_custom_call.1} parent=5 // pred_check_branch
      %673 = sbr.rel (%p671) target = $region60
    $region59: #{tpu_custom_call.1} parent=5 // pred_region
      %s674 = ssub.s32 %s15, 2
      // Predicated region
      $region61: #{tpu_custom_call.1} parent=59 // pred_check
        %p675 = pneg %p196
      $region62: #{tpu_custom_call.1} parent=59 // pred_check_branch
        %677 = sbr.rel (%p675) target = $region64
      $region63: #{tpu_custom_call.1} parent=59 // pred_region
        %s678 = smul.u32 4, %s21
        %p679 = scmp.lt.s32.totalorder %s678, 7
        %s680 = scalar_select %p679, %s678, 7
        %s681 = smul.addr %s680, 8
        %s682 = scalar_lea.vmem %s7, %s681
      $region64: #{tpu_custom_call.1} parent=59 // pred_fallthru
        _
      // Predicated region
      $region65: #{tpu_custom_call.1} parent=59 // pred_check
        %p683 = pneg %p222
      $region66: #{tpu_custom_call.1} parent=59 // pred_check_branch
        %685 = sbr.rel (%p683) target = $region68
      $region67: #{tpu_custom_call.1} parent=59 // pred_region
        %s686 = smul.u32 4, %s21
        %p687 = scmp.lt.s32.totalorder %s686, 7
        %s688 = scalar_select %p687, %s686, 7
        %s689 = smul.addr %s688, 8
        %s690 = scalar_lea.vmem %s8, %s689
      $region68: #{tpu_custom_call.1} parent=59 // pred_fallthru
        _
    $region60: #{tpu_custom_call.1} parent=5 // pred_fallthru
      _
  $region6: #{tpu_custom_call.1} parent=0 // loop_footer
    %s19 = sadd.s32 1, %s15
  $region7: #{tpu_custom_call.1} parent=0 // loop_footer_branch
    %14 = sbr.rel target = $region3
  $region8: #{tpu_custom_call.1} parent=0 // loop_exit
    _

</llo_original>
